<compile_context>
chip_gen: v7x
topology: tpu7x:2x2x1
jax: 0.10.0
libtpu: 0.0.40
codegen_flags: <defaults>
</compile_context>

<pallas_src>
import math

import jax
import jax.numpy as jnp
from jax.experimental import pallas as pl
from jax.experimental.pallas import tpu as pltpu


# ---------------------------------------------------------------------------
# Kernels
# ---------------------------------------------------------------------------

def _h_block(h_ref, tk, k):
    """(bt, tk) activation slice for reduction step k.

    If the whole Din extent is VMEM-resident (h block == (bt, Din)) slice it
    in-register; otherwise the BlockSpec already delivered a (bt, tk) block.
    """
    if h_ref.shape[1] == tk:
        return h_ref[...]
    start = pl.multiple_of(k * tk, tk)
    return h_ref[:, pl.ds(start, tk)]


def _ensemble_kernel_single(h_ref, w_ref, b_ref, o_ref):
    # Single K step: no accumulator scratch, no RMW -- write result directly.
    part = jax.lax.dot_general(
        h_ref[...], w_ref[0],
        dimension_numbers=(((1,), (1,)), ((), ())),
        preferred_element_type=jnp.float32)
    o_ref[0] = (part + b_ref[0]).astype(o_ref.dtype)


def _ensemble_kernel_acc(h_ref, w_ref, b_ref, o_ref, acc_ref):
    # grid = (B_tiles, LG, N_tiles, K_tiles); K (reduction) is innermost.
    k = pl.program_id(3)
    tk = w_ref.shape[2]

    @pl.when(k == 0)
    def _init():
        acc_ref[...] = jnp.zeros_like(acc_ref)

    acc_ref[...] += jax.lax.dot_general(
        _h_block(h_ref, tk, k), w_ref[0],
        dimension_numbers=(((1,), (1,)), ((), ())),
        preferred_element_type=jnp.float32)

    @pl.when(k == pl.num_programs(3) - 1)
    def _finalize():
        o_ref[0] = (acc_ref[...] + b_ref[0]).astype(o_ref.dtype)


# ---------------------------------------------------------------------------
# Tiling / grouping heuristics
# ---------------------------------------------------------------------------

def _round_up(x, m):
    return ((x + m - 1) // m) * m


def _divisors(n):
    return [d for d in range(1, n + 1) if n % d == 0]


def _choose_group(num_ensemble, out_dim):
    """Pick (TL, Dout_padded): group TL ensemble members per grid step so the
    grouped output width TL*Dout is lane-dense, padding Dout only if even
    TL = L stays below 128 lanes."""
    divs = _divisors(num_ensemble)
    for t in divs:                       # best: multiple of 128 -> unmasked stores
        if (t * out_dim) % 128 == 0:
            return t, out_dim
    for t in divs:                       # ok: >= 128 lanes, unpadded
        if t * out_dim >= 128:
            return t, out_dim
    # Even full grouping is < 128 lanes: pad Dout so L*Dout_p is a 128 multiple.
    per = 128 // math.gcd(num_ensemble, 128)
    out_p = _round_up(out_dim, per)
    for t in divs:
        if (t * out_p) % 128 == 0:
            return t, out_p
    return num_ensemble, out_p


def _pick_tile(dim, max_tile):
    """Largest tile <= max_tile that divides dim, preferring multiples of 256
    (v6e/v7x MXU), then 128; falls back to the full extent."""
    for unit in (256, 128):
        if dim % unit == 0 and max_tile >= unit:
            t = min(dim, (max_tile // unit) * unit)
            while t >= unit:
                if dim % t == 0:
                    return t
                t -= unit
    return dim


def _vmem_limit_bytes():
    try:
        cap = pltpu.get_tpu_info().vmem_capacity_bytes
    except Exception:
        cap = 64 * 1024 * 1024           # conservative (v7x-sized) fallback
    # ~48 MiB on v7x (64 MiB physical), ~96 MiB on v5e/v6e (128 MiB physical).
    return int(cap * 3 // 4)


# ---------------------------------------------------------------------------
# Wrapper
# ---------------------------------------------------------------------------

def ensemble_linear(h, weight, bias=None, *, stream_dtype=None, max_weight_tile=1024):
    """h: [B, Din], weight: [L, Dout, Din], bias: [L, 1, Dout] or None -> [L, B, Dout].

    stream_dtype: optional dtype (e.g. jnp.bfloat16) to stream weights and
    activations in; accumulation and the bias add stay in float32.
    """
    # TODO(synk): the PyTorch module also broadcasts over leading dims
    # ([..., L, B, Din] / [..., 1, B, Din]); only the 2-D [B, Din] input is handled.
    B, Din = h.shape
    L, Dout, Din_w = weight.shape
    assert Din == Din_w, (Din, Din_w)
    out_dtype = h.dtype
    if bias is None:
        bias = jnp.zeros((L, 1, Dout), dtype=jnp.float32)

    # --- group ensemble members for a lane-dense output slab ---
    TL, Dout_p = _choose_group(L, Dout)
    if Dout_p != Dout:
        weight = jnp.pad(weight, ((0, 0), (0, Dout_p - Dout), (0, 0)))
        bias = jnp.pad(bias, ((0, 0), (0, 0), (0, Dout_p - Dout)))
    LG = L // TL
    N = TL * Dout_p
    wg = weight.reshape(LG, N, Din)                # [LG, TL*Dout_p, Din]
    bg = bias.reshape(LG, 1, N).astype(jnp.float32)  # bias add stays f32

    h_c = h
    if stream_dtype is not None:                   # halve HBM bytes when mem-bound
        wg = wg.astype(stream_dtype)
        h_c = h_c.astype(stream_dtype)

    h_item = jnp.dtype(h_c.dtype).itemsize
    w_item = jnp.dtype(wg.dtype).itemsize
    o_item = jnp.dtype(out_dtype).itemsize

    # --- pad / tile the batch dim (sublane-aligned, bounded working set) ---
    sub = {4: 8, 2: 16, 1: 32}.get(h_item, 8)
    bt = min(512, _round_up(B, sub))
    B_p = _round_up(B, bt)

    # --- VMEM-budgeted tile selection ---
    vmem_limit = _vmem_limit_bytes()
    budget = int(vmem_limit * 0.85)                # headroom for Mosaic scratch
    full_h = 2 * bt * Din * h_item <= budget // 4  # keep whole (bt, Din) slab resident
    max_wt = max(128, max_weight_tile)
    while True:
        tn = _pick_tile(N, max_wt)
        tk = _pick_tile(Din, max_wt)
        h_bytes = 2 * bt * (Din if full_h else tk) * h_item
        need = (2 * tn * tk * w_item               # weight tile, double-buffered
                + h_bytes                          # activations
                + 2 * bt * tn * o_item             # output tile, double-buffered
                + bt * tn * 4                      # f32 accumulator
                + 2 * tn * 4)                      # bias tile
        if need <= budget:
            break
        if max_wt > 128:
            max_wt //= 2
        elif bt > sub and bt % (2 * sub) == 0:
            bt //= 2
            B_p = _round_up(B, bt)
            full_h = 2 * bt * Din * h_item <= budget // 4
        else:
            break

    # --- v7x megacore: ensure parallel grid extent >= 2 when cheap ---
    if (B_p // bt) * LG * (N // tn) < 2:
        if N == tn and tn % 256 == 0:
            tn //= 2
        elif bt > sub and bt % (2 * sub) == 0:
            bt //= 2
            B_p = _round_up(B, bt)

    n_k = Din // tk
    grid = (B_p // bt, LG, N // tn, n_k)           # reduction axis innermost

    h_p = h_c if B_p == B else jnp.pad(h_c, ((0, B_p - B), (0, 0)))

    if full_h:
        # h block index depends only on the outermost b axis -> DMA'd once per
        # batch tile, not once per (l, n, k) step.
        h_spec = pl.BlockSpec((bt, Din), lambda b, l, n, k: (b, 0))
    else:
        h_spec = pl.BlockSpec((bt, tk), lambda b, l, n, k: (b, k))

    if n_k == 1:
        kernel = _ensemble_kernel_single
        scratch = []
    else:
        kernel = _ensemble_kernel_acc
        scratch = [pltpu.VMEM((bt, tn), jnp.float32)]

    h_traffic = B_p * Din * h_item * (1 if full_h else LG * (N // tn))
    cost = pl.CostEstimate(
        flops=2 * L * B_p * Dout_p * Din,
        transcendentals=0,
        bytes_accessed=int(wg.size * w_item + bg.size * 4 + h_traffic
                           + LG * B_p * N * o_item),
    )

    out_g = pl.pallas_call(
        kernel,
        out_shape=jax.ShapeDtypeStruct((LG, B_p, N), out_dtype),
        grid_spec=pltpu.PrefetchScalarGridSpec(
            num_scalar_prefetch=0,
            grid=grid,
            in_specs=[
                h_spec,
                pl.BlockSpec((1, tn, tk), lambda b, l, n, k: (l, n, k)),
                pl.BlockSpec((1, 1, tn), lambda b, l, n, k: (l, 0, n)),
            ],
            out_specs=pl.BlockSpec((1, bt, tn), lambda b, l, n, k: (l, b, n)),
            scratch_shapes=scratch,
        ),
        compiler_params=pltpu.CompilerParams(
            dimension_semantics=("parallel", "parallel", "parallel", "arbitrary"),
            vmem_limit_bytes=vmem_limit,
        ),
        cost_estimate=cost,
    )(h_p, wg, bg)

    # --- ungroup / unpad (skipped when it would be a no-op) ---
    if TL == 1:
        out = out_g                                # already (L, B_p, Dout_p)
    else:
        out = (out_g.reshape(LG, B_p, TL, Dout_p)
                     .transpose(0, 2, 1, 3)
                     .reshape(L, B_p, Dout_p))
    if B_p != B or Dout_p != Dout:
        out = out[:, :B, :Dout]
    return out


# ---------------------------------------------------------------------------
# Demo / correctness check
# ---------------------------------------------------------------------------

def _xavier_uniform(key, shape, dtype=jnp.float32):
    # shape = (L, Dout, Din); per-member fan_in = Din, fan_out = Dout.
    fan_in, fan_out = shape[-1], shape[-2]
    limit = (6.0 / (fan_in + fan_out)) ** 0.5
    return jax.random.uniform(key, shape, dtype=dtype, minval=-limit, maxval=limit)


def _reference(h, weight, bias):
    return jnp.einsum("lod,bd->lbo", weight, h) + bias


if __name__ == "__main__":
    key = jax.random.PRNGKey(0)
    k1, k2, k3, k4, k5, k6 = jax.random.split(key, 6)

    # Case 1: tiny module-like shapes (L*Dout < 128 -> grouping + lane padding).
    L, B, Din, Dout = 4, 8, 32, 16
    w1 = _xavier_uniform(k1, (L, Dout, Din))
    b1 = jnp.zeros((L, 1, Dout), jnp.float32)          # matches nn.init.zeros_
    h1 = jax.random.normal(k2, (B, Din), jnp.float32)
    out1 = jax.block_until_ready(ensemble_linear(h1, w1, b1))
    assert out1.shape == (L, B, Dout)
    assert jnp.allclose(out1, _reference(h1, w1, b1), atol=1e-5, rtol=1e-5)

    # Case 2: exercises the multi-K f32 accumulator path and in-kernel h slicing
    # (max_weight_tile=128 -> 2 K steps), plus TL=2 grouping.
    L2, B2, Din2, Dout2 = 6, 16, 256, 64
    w2 = _xavier_uniform(k3, (L2, Dout2, Din2))
    b2 = jnp.zeros((L2, 1, Dout2), jnp.float32)
    h2 = jax.random.normal(k4, (B2, Din2), jnp.float32)
    out2 = jax.block_until_ready(ensemble_linear(h2, w2, b2, max_weight_tile=128))
    assert out2.shape == (L2, B2, Dout2)
    assert jnp.allclose(out2, _reference(h2, w2, b2), atol=1e-4, rtol=1e-4)

    # Case 3: bf16 weight/activation streaming with f32 accumulate + f32 bias.
    L3, B3, Din3, Dout3 = 2, 32, 128, 128
    w3 = _xavier_uniform(k5, (L3, Dout3, Din3))
    b3 = jnp.zeros((L3, 1, Dout3), jnp.float32)
    h3 = jax.random.normal(k6, (B3, Din3), jnp.float32)
    out3 = jax.block_until_ready(
        ensemble_linear(h3, w3, b3, stream_dtype=jnp.bfloat16))
    ref3 = _reference(h3.astype(jnp.bfloat16).astype(jnp.float32),
                      w3.astype(jnp.bfloat16).astype(jnp.float32), b3)
    assert out3.shape == (L3, B3, Dout3)
    assert jnp.allclose(out3, ref3, atol=5e-3, rtol=5e-3)

    print("KERNEL_OK")
</pallas_src>

<mosaic_0001>
module attributes {stable_mosaic.version = 11 : i64} {
  func.func @_ensemble_kernel_single(%arg0: i32, %arg1: i32, %arg2: i32, %arg3: i32, %arg4: memref<8x32xf32, #tpu.memory_space<vmem>>, %arg5: memref<1x128x32xf32, #tpu.memory_space<vmem>>, %arg6: memref<1x1x128xf32, #tpu.memory_space<vmem>>, %arg7: memref<1x8x128xf32, #tpu.memory_space<vmem>>) attributes {dimension_semantics = [#tpu.dimension_semantics<parallel>, #tpu.dimension_semantics<parallel>, #tpu.dimension_semantics<parallel>, #tpu.dimension_semantics<arbitrary>], iteration_bounds = array<i64: 1, 1, 1, 1>, scalar_prefetch = 0 : i64, scratch_operands = 0 : i64, tpu.core_type = #tpu.core_type<tc>, window_params = [{transform_indices = @transform_0, window_bounds = array<i64: 8, 32>}, {transform_indices = @transform_1, window_bounds = array<i64: 1, 128, 32>}, {transform_indices = @transform_2, window_bounds = array<i64: 1, 1, 128>}, {transform_indices = @transform_3, window_bounds = array<i64: 1, 8, 128>}]} {
    %c0 = arith.constant 0 : index
    %c0_0 = arith.constant 0 : index
    %0 = vector.load %arg4[%c0, %c0_0] : memref<8x32xf32, #tpu.memory_space<vmem>>, vector<8x32xf32>
    %c0_1 = arith.constant 0 : index
    %c0_2 = arith.constant 0 : index
    %c0_3 = arith.constant 0 : index
    %1 = vector.load %arg5[%c0_1, %c0_2, %c0_3] : memref<1x128x32xf32, #tpu.memory_space<vmem>>, vector<1x128x32xf32>
    %2 = vector.shape_cast %1 : vector<1x128x32xf32> to vector<128x32xf32>
    %cst = arith.constant dense<0.000000e+00> : vector<8x128xf32>
    %3 = tpu.matmul %0, %2, %cst {dimension_numbers = #tpu.dot_dimension_numbers<[1], [1], [0], [0], [0, 0, 1, 0], [], []>} : vector<8x32xf32>, vector<128x32xf32>, vector<8x128xf32> -> vector<8x128xf32>
    %c0_4 = arith.constant 0 : index
    %c0_5 = arith.constant 0 : index
    %c0_6 = arith.constant 0 : index
    %4 = vector.load %arg6[%c0_4, %c0_5, %c0_6] : memref<1x1x128xf32, #tpu.memory_space<vmem>>, vector<1x1x128xf32>
    %5 = vector.shape_cast %4 : vector<1x1x128xf32> to vector<1x128xf32>
    %6 = vector.broadcast %5 : vector<1x128xf32> to vector<8x128xf32>
    %7 = arith.addf %3, %6 : vector<8x128xf32>
    %c0_7 = arith.constant 0 : index
    %c0_8 = arith.constant 0 : index
    %c0_9 = arith.constant 0 : index
    %8 = vector.load %arg7[%c0_7, %c0_8, %c0_9] : memref<1x8x128xf32, #tpu.memory_space<vmem>>, vector<1x8x128xf32>
    %9 = vector.shape_cast %8 : vector<1x8x128xf32> to vector<8x128xf32>
    %10 = vector.shape_cast %7 : vector<8x128xf32> to vector<1x8x128xf32>
    tpu.vector_store %arg7[%c0_7, %c0_8, %c0_9], %10 {strides = array<i32>} : memref<1x8x128xf32, #tpu.memory_space<vmem>>, vector<1x8x128xf32>,
    return
  }
  func.func @transform_0(%arg0: i32, %arg1: i32, %arg2: i32, %arg3: i32) -> (i32, i32) {
    %c0_i32 = arith.constant 0 : i32
    %c0_i32_0 = arith.constant 0 : i32
    return %arg0, %c0_i32 : i32, i32
  }
  func.func @transform_1(%arg0: i32, %arg1: i32, %arg2: i32, %arg3: i32) -> (i32, i32, i32) {
    %c0_i32 = arith.constant 0 : i32
    return %arg1, %arg2, %arg3 : i32, i32, i32
  }
  func.func @transform_2(%arg0: i32, %arg1: i32, %arg2: i32, %arg3: i32) -> (i32, i32, i32) {
    %c0_i32 = arith.constant 0 : i32
    %c0_i32_0 = arith.constant 0 : i32
    return %arg1, %c0_i32, %arg2 : i32, i32, i32
  }
  func.func @transform_3(%arg0: i32, %arg1: i32, %arg2: i32, %arg3: i32) -> (i32, i32, i32) {
    %c0_i32 = arith.constant 0 : i32
    return %arg1, %arg0, %arg2 : i32, i32, i32
  }
}

</mosaic_0001>

<llo_original>
// kernel: tpu_custom_call.1
$region0: #{tpu_custom_call.1}
  #allocation0 [shape = 'u32[]', space=smem, size = 0x4, offset = 0x4, fixed_abs, tag = 'smem constant byte address 0x4 - core index']
  #allocation1 [shape = 'u32[144,128]{1,0:T(1,128)}', space=vmem, size = 0x12000, scoped, tag = 'internal scratch']
  %s0 = inlined_call_operand.vmem [shape: f32[8,32], index: 0, kind: input, shape index: {}]
  %s1 = inlined_call_operand.vmem [shape: f32[1,128,32], index: 1, kind: input, shape index: {}]
  %s2 = inlined_call_operand.vmem [shape: f32[1,1,128], index: 2, kind: input, shape index: {}]
  %s3 = inlined_call_operand.hbm [shape: f32[1,8,128], index: 3, kind: output, shape index: {}]
  %s4 = sld [smem:[#allocation0]]
  $region22: #{tpu_custom_call.1} parent=0
    _
  %s6 = ssub.s32 1, %s4
  %s7 = scalar_select 0, %s6, %s4
  $region1: #{tpu_custom_call.1} parent=0
    #allocation2 [shape = 'u8[4096]{0}', space=vmem, size = 0x1000, scoped, tag = 'output window, operand 0, single buffered']
    #allocation3 [shape = 's32[1]{0}', space=sflag, size = 0x4, scoped, tag = 'scoped memory for tpu_custom_call.1']
    %8 = vsyncpa [#allocation3], 0
    // Predicated region
    $region2: #{tpu_custom_call.1} parent=1 // pred_check
      _
    $region3: #{tpu_custom_call.1} parent=1 // pred_check_branch
      %10 = sbr.rel (0) target = $region5
    $region4: #{tpu_custom_call.1} parent=1 // pred_region
      _
    $region5: #{tpu_custom_call.1} parent=1 // pred_fallthru
      _
    // Predicated region
    $region6: #{tpu_custom_call.1} parent=1 // pred_check
      _
    $region7: #{tpu_custom_call.1} parent=1 // pred_check_branch
      %12 = sbr.rel (0) target = $region9
    $region8: #{tpu_custom_call.1} parent=1 // pred_region
      _
    $region9: #{tpu_custom_call.1} parent=1 // pred_fallthru
      _
    // Predicated region
    $region10: #{tpu_custom_call.1} parent=1 // pred_check
      _
    $region11: #{tpu_custom_call.1} parent=1 // pred_check_branch
      %14 = sbr.rel (0) target = $region13
    $region12: #{tpu_custom_call.1} parent=1 // pred_region
      _
    $region13: #{tpu_custom_call.1} parent=1 // pred_fallthru
      _
    %v15 = vld [vmem:[%s0] sm:$0xff]
    %v16 = vld [vmem:[%s1] sm:$0xff]
    %v17 = vld [vmem:[%s1 + $0x8] sm:$0xff]
    %v18 = vld [vmem:[%s1 + $0x10] sm:$0xff]
    %v19 = vld [vmem:[%s1 + $0x18] sm:$0xff]
    %v20 = vld [vmem:[%s1 + $0x20] sm:$0xff]
    %v21 = vld [vmem:[%s1 + $0x28] sm:$0xff]
    %v22 = vld [vmem:[%s1 + $0x30] sm:$0xff]
    %v23 = vld [vmem:[%s1 + $0x38] sm:$0xff]
    %v24 = vld [vmem:[%s1 + $0x40] sm:$0xff]
    %v25 = vld [vmem:[%s1 + $0x48] sm:$0xff]
    %v26 = vld [vmem:[%s1 + $0x50] sm:$0xff]
    %v27 = vld [vmem:[%s1 + $0x58] sm:$0xff]
    %v28 = vld [vmem:[%s1 + $0x60] sm:$0xff]
    %v29 = vld [vmem:[%s1 + $0x68] sm:$0xff]
    %v30 = vld [vmem:[%s1 + $0x70] sm:$0xff]
    %v31 = vld [vmem:[%s1 + $0x78] sm:$0xff]
    %v32 = vld [vmem:[%s2] sm:$0x1]
    %v34 = vlaneseq
    %v35 = vshrl.u32 %v34, 7
    %v36 = vsub.s32 0, %v35
    %v37 = vrot.slane %v32, %v36
    %vm39 = vcmask 261120
    %v41 = vsel %vm39, %v15, 0
    %v44 = vsel %vm39, %v16, 0
    %v47 = vsel %vm39, %v17, 0
    %v50 = vsel %vm39, %v18, 0
    %v53 = vsel %vm39, %v19, 0
    %v56 = vsel %vm39, %v20, 0
    %v59 = vsel %vm39, %v21, 0
    %v62 = vsel %vm39, %v22, 0
    %v65 = vsel %vm39, %v23, 0
    %v68 = vsel %vm39, %v24, 0
    %v71 = vsel %vm39, %v25, 0
    %v74 = vsel %vm39, %v26, 0
    %v77 = vsel %vm39, %v27, 0
    %v80 = vsel %vm39, %v28, 0
    %v83 = vsel %vm39, %v29, 0
    %v86 = vsel %vm39, %v30, 0
    %v89 = vsel %vm39, %v31, 0
    %91 = vmatprep.subr.mxu0 0.0
    %92 = vmatpush1.xpose.msra.mxu0 %v44
    %93 = vmatprep.subr.mxu0 0.0
    %94 = vmatpush1.xpose.msra.mxu0 %v47
    %95 = vmatprep.subr.mxu0 0.0
    %96 = vmatpush1.xpose.msra.mxu0 %v50
    %97 = vmatprep.subr.mxu0 0.0
    %98 = vmatpush1.xpose.msra.mxu0 %v53
    %99 = vmatprep.subr.mxu0 0.0
    %100 = vmatpush1.xpose.msra.mxu0 %v56
    %101 = vmatprep.subr.mxu0 0.0
    %102 = vmatpush1.xpose.msra.mxu0 %v59
    %103 = vmatprep.subr.mxu0 0.0
    %104 = vmatpush1.xpose.msra.mxu0 %v62
    %105 = vmatprep.subr.mxu0 0.0
    %106 = vmatpush1.xpose.msra.mxu0 %v65
    %107 = vmatprep.subr.mxu0 0.0
    %108 = vmatpush1.xpose.msra.mxu0 %v68
    %109 = vmatprep.subr.mxu0 0.0
    %110 = vmatpush1.xpose.msra.mxu0 %v71
    %111 = vmatprep.subr.mxu0 0.0
    %112 = vmatpush1.xpose.msra.mxu0 %v74
    %113 = vmatprep.subr.mxu0 0.0
    %114 = vmatpush1.xpose.msra.mxu0 %v77
    %115 = vmatprep.subr.mxu0 0.0
    %116 = vmatpush1.xpose.msra.mxu0 %v80
    %117 = vmatprep.subr.mxu0 0.0
    %118 = vmatpush1.xpose.msra.mxu0 %v83
    %119 = vmatprep.subr.mxu0 0.0
    %120 = vmatpush1.xpose.msra.mxu0 %v86
    %121 = vmatprep.subr.mxu0 0.0
    %122 = vmatpush1.xpose.msra.mxu0 %v89
    %123 = vmatprep.subr.mxu0 0.0
    %124 = vmatpush1.xpose.msra.mxu0 0.0
    %125 = vmatprep.subr.mxu0 0.0
    %126 = vmatpush1.xpose.msra.mxu0 0.0
    %127 = vmatprep.subr.mxu0 0.0
    %128 = vmatpush1.xpose.msra.mxu0 0.0
    %129 = vmatprep.subr.mxu0 0.0
    %130 = vmatpush1.xpose.msra.mxu0 0.0
    %131 = vmatprep.subr.mxu0 0.0
    %132 = vmatpush1.xpose.msra.mxu0 0.0
    %133 = vmatprep.subr.mxu0 0.0
    %134 = vmatpush1.xpose.msra.mxu0 0.0
    %135 = vmatprep.subr.mxu0 0.0
    %136 = vmatpush1.xpose.msra.mxu0 0.0
    %137 = vmatprep.subr.mxu0 0.0
    %138 = vmatpush1.xpose.msra.mxu0 0.0
    %139 = vmatprep.subr.mxu0 0.0
    %140 = vmatpush1.xpose.msra.mxu0 0.0
    %141 = vmatprep.subr.mxu0 0.0
    %142 = vmatpush1.xpose.msra.mxu0 0.0
    %143 = vmatprep.subr.mxu0 0.0
    %144 = vmatpush1.xpose.msra.mxu0 0.0
    %145 = vmatprep.subr.mxu0 0.0
    %146 = vmatpush1.xpose.msra.mxu0 0.0
    %147 = vmatprep.subr.mxu0 0.0
    %148 = vmatpush1.xpose.msra.mxu0 0.0
    %149 = vmatprep.subr.mxu0 0.0
    %150 = vmatpush1.xpose.msra.mxu0 0.0
    %151 = vmatprep.subr.mxu0 0.0
    %152 = vmatpush1.xpose.msra.mxu0 0.0
    %153 = vmatprep.subr.mxu0 0.0
    %154 = vmatpush1.xpose.msra.mxu0 0.0
    %155 = vmatprep.mubr.f32.mxu0 0.0
    %156 = vmatmul.mubr.f32.gmra.mrb[0].mxu0 %v41
    %v157 = vpop.f32.mrb[0].mxu0
    %v158 = vadd.f32 %v37, %v157
    %v159 = vpop.f32.mrb[0].mxu0
    %160 = vdwg.mxu0
    %161 = vst [vmem:[#allocation2] sm:$0xff] %v158
    // Predicated region
    $region14: #{tpu_custom_call.1} parent=1 // pred_check
      _
    $region15: #{tpu_custom_call.1} parent=1 // pred_check_branch
      %163 = sbr.rel (0) target = $region17
    $region16: #{tpu_custom_call.1} parent=1 // pred_region
      %s165 = ssub.s32 128, 128
      %166 = vsyncadd [#allocation3], %s165
      %s168 = sshll.u32 [#allocation2], 4
      %s169 = int_to_ptr.vmem [resolvable:$true] %s168
      %171 = dma.vmem_to_hbm [thread:$0]  %s169, 128, %s3, [#allocation3]
    $region17: #{tpu_custom_call.1} parent=1 // pred_fallthru
      _
    // Predicated region
    $region18: #{tpu_custom_call.1} parent=1 // pred_check
      _
    $region19: #{tpu_custom_call.1} parent=1 // pred_check_branch
      %173 = sbr.rel (0) target = $region21
    $region20: #{tpu_custom_call.1} parent=1 // pred_region
      %174 = dma.done [#allocation3], 128
    $region21: #{tpu_custom_call.1} parent=1 // pred_fallthru
      _
    %175 = vsyncpa [#allocation3], 1

</llo_original>
